<compile_context>
chip_gen: v7x
topology: tpu7x:2x2x1
jax: 0.10.0
libtpu: 0.0.40
codegen_flags: <defaults>
</compile_context>

<pallas_src>
import functools

import jax
import jax.numpy as jnp
from jax import lax
from jax.experimental import pallas as pl
from jax.experimental.pallas import tpu as pltpu

_LANES = 128


def _kl_div_kernel(x_ref, tx_ref, w_ref, tw_ref, loss_ref,
                   sm_ref, sd_ref, tm_ref, td_ref, wa_ref):
    """Grid: (N // BN, V // BV). Vocab axis is the (serial) reduction axis."""
    iv = pl.program_id(1)
    nv = pl.num_programs(1)

    @pl.when(iv == 0)
    def _():
        sm_ref[...] = jnp.full_like(sm_ref, -jnp.inf)
        tm_ref[...] = jnp.full_like(tm_ref, -jnp.inf)
        sd_ref[...] = jnp.zeros_like(sd_ref)
        td_ref[...] = jnp.zeros_like(td_ref)
        wa_ref[...] = jnp.zeros_like(wa_ref)

    x = x_ref[...]        # (BN, H)  matmul dtype (bf16 default, or f32)
    tx = tx_ref[...]      # (BN, H)
    w = w_ref[...]        # (BV, H)
    tw = tw_ref[...]      # (BV, H)

    # (BN, H) x (BV, H)^T -> (BN, BV): contract over H (lane dim of both
    # operands); the MXU supports the transposed-RHS feed natively, f32 acc.
    # TODO(synk): verify via bundle dump that this NT lowering emits no
    # per-step vxpose; if it does, pre-transpose weights to (H, V) in the
    # wrapper and switch to standard (((1,),(0,)),((),())) dimension_numbers.
    dn = (((1,), (1,)), ((), ()))
    s_logits = lax.dot_general(x, w, dn, preferred_element_type=jnp.float32)
    t_logits = lax.dot_general(tx, tw, dn, preferred_element_type=jnp.float32)

    n_chunks = s_logits.shape[-1] // _LANES

    # ---- pass 1: per-lane max over this tile's chunks (pure VPU max) ----
    # Lane j of each (BN, 128) accumulator owns vocab entries with
    # (index mod 128) == j; all chunk folds are element-wise, no XLU work.
    s_tile_max = s_logits[:, 0:_LANES]
    t_tile_max = t_logits[:, 0:_LANES]
    for c in range(1, n_chunks):
        s_tile_max = jnp.maximum(s_tile_max, s_logits[:, c * _LANES:(c + 1) * _LANES])
        t_tile_max = jnp.maximum(t_tile_max, t_logits[:, c * _LANES:(c + 1) * _LANES])

    # Merge with running max and rescale the running sums ONCE per grid step.
    sm_old = sm_ref[...]
    tm_old = tm_ref[...]
    sm_new = jnp.maximum(sm_old, s_tile_max)
    tm_new = jnp.maximum(tm_old, t_tile_max)
    s_alpha = jnp.exp(sm_old - sm_new)          # exp(-inf - finite) = 0 at iv==0
    t_alpha = jnp.exp(tm_old - tm_new)

    sd = sd_ref[...] * s_alpha
    td = td_ref[...] * t_alpha
    wa = wa_ref[...] * t_alpha

    # ---- pass 2: 2 EUP exps per logit element, accumulate into values ----
    for c in range(n_chunks):
        sl = s_logits[:, c * _LANES:(c + 1) * _LANES]   # static, lane-aligned
        tl = t_logits[:, c * _LANES:(c + 1) * _LANES]
        sd = sd + jnp.exp(sl - sm_new)
        t_exp = jnp.exp(tl - tm_new)                    # unnormalized target probs
        td = td + t_exp
        wa = wa + t_exp * (tl - sl)

    # Single set of scratch-ref stores per vocab grid step.
    sm_ref[...] = sm_new
    tm_ref[...] = tm_new
    sd_ref[...] = sd
    td_ref[...] = td
    wa_ref[...] = wa

    @pl.when(iv == nv - 1)
    def _():
        # Single set of cross-lane (XLU) combines per row tile.
        sm_row = sm_new.max(axis=-1, keepdims=True)                       # (BN, 1)
        sd_row = (sd * jnp.exp(sm_new - sm_row)).sum(axis=-1, keepdims=True)
        tm_row = tm_new.max(axis=-1, keepdims=True)
        t_scale = jnp.exp(tm_new - tm_row)
        td_row = (td * t_scale).sum(axis=-1, keepdims=True)
        wa_row = (wa * t_scale).sum(axis=-1, keepdims=True)

        s_lse = sm_row + jnp.log(sd_row)
        t_lse = tm_row + jnp.log(td_row)
        # KL_n = sum_v p_v * (t_logit_v - s_logit_v) - t_lse + s_lse
        loss_ref[...] = wa_row / td_row + (s_lse - t_lse)


def _vmem_cap_bytes():
    """Chip-aware ceiling: ~80% of physical VMEM (fallback 128 MiB class)."""
    cap = 0
    try:
        info = pltpu.get_tpu_info()
        for name in ("vmem_capacity_bytes", "vmem_size_bytes", "vmem_bytes"):
            cap = int(getattr(info, name, 0) or 0)
            if cap > 0:
                break
    except Exception:
        cap = 0
    if cap <= 0:
        cap = 128 * 1024 * 1024   # v5e/v6e physical; v7x path relies on the query
    return int(cap * 0.8)


def _vmem_limit_bytes(block_n, block_v, H, in_itemsize):
    # Double-buffered input tiles + f32 logit temporaries + accumulators + out.
    inputs = 2 * 2 * (block_n + block_v) * H * in_itemsize
    logits = 2 * block_n * block_v * 4
    scratch = 5 * block_n * _LANES * 4
    out = 2 * block_n * 4
    est = inputs + logits + scratch + out
    # 2x headroom; never below 8 MiB, capped chip-aware (leaves compiler
    # internal-scratch headroom on v7x, allows big BV tiles on v5e/v6e).
    return int(min(max(2 * est, 8 * 1024 * 1024), _vmem_cap_bytes()))


@functools.partial(jax.jit,
                   static_argnames=("block_n", "block_v", "matmul_dtype"))
def fused_kl_div_loss(x, target_x, weight, target_weight,
                      *, block_n=256, block_v=512, matmul_dtype=jnp.bfloat16):
    """Scalar 'batchmean' KL-divergence loss (float32).

    block_n : rows per tile (256 default; weight restreaming ~ N/block_n).
    block_v : vocab per tile, multiple of 128 (512 default; with bf16 weights
        1024 fits comfortably on v7x, 1024-2048 on v5e/v6e 128 MiB VMEM).
    matmul_dtype : dtype of the projection inputs. Default bf16 (fast MXU
        path, f32 accumulation); pass None (or jnp.float32) to keep f32.
        Softmax / log / exp math is f32 either way.
    """
    N, H = x.shape
    V = weight.shape[0]

    block_n = min(block_n, N)
    block_v = min(block_v, V)
    # TODO(synk): production remainder path must mask tail vocab entries to
    # -inf before the online update; this demo assumes divisible tiles.
    assert N % block_n == 0 and V % block_v == 0, "demo assumes divisible tiles"
    assert block_v % _LANES == 0, "block_v must be a multiple of 128"

    if matmul_dtype is not None:
        x = x.astype(matmul_dtype)
        target_x = target_x.astype(matmul_dtype)
        weight = weight.astype(matmul_dtype)
        target_weight = target_weight.astype(matmul_dtype)

    itemsize = jnp.dtype(x.dtype).itemsize
    cost = pl.CostEstimate(
        flops=4 * N * V * H,                       # two N x V x H matmuls
        transcendentals=4 * N * V,                 # exps in the online LSE
        bytes_accessed=int(2 * (N // block_n) * V * H * itemsize
                           + 2 * N * H * itemsize + N * 4),
    )

    per_row = pl.pallas_call(
        _kl_div_kernel,
        out_shape=jax.ShapeDtypeStruct((N, 1), jnp.float32),
        grid_spec=pltpu.PrefetchScalarGridSpec(
            num_scalar_prefetch=0,
            grid=(N // block_n, V // block_v),
            in_specs=[
                pl.BlockSpec((block_n, H), lambda i, v: (i, 0)),   # x
                pl.BlockSpec((block_n, H), lambda i, v: (i, 0)),   # target_x
                pl.BlockSpec((block_v, H), lambda i, v: (v, 0)),   # weight
                pl.BlockSpec((block_v, H), lambda i, v: (v, 0)),   # target_weight
            ],
            out_specs=pl.BlockSpec((block_n, 1), lambda i, v: (i, 0)),
            scratch_shapes=[
                pltpu.VMEM((block_n, _LANES), jnp.float32),   # student running max
                pltpu.VMEM((block_n, _LANES), jnp.float32),   # student running denom
                pltpu.VMEM((block_n, _LANES), jnp.float32),   # target running max
                pltpu.VMEM((block_n, _LANES), jnp.float32),   # target running denom
                pltpu.VMEM((block_n, _LANES), jnp.float32),   # weighted (t-s) accum
            ],
        ),
        compiler_params=pltpu.CompilerParams(
            # TODO(synk): on v7x (2 TensorCores) with tiny N, split the vocab
            # axis across cores (core_map) and combine the 5 lane-resident
            # accumulators cross-core; row-parallel is fine when N/block_n >= 2.
            dimension_semantics=("parallel", "arbitrary"),
            vmem_limit_bytes=_vmem_limit_bytes(block_n, block_v, H, itemsize),
        ),
        cost_estimate=cost,
    )(x, target_x, weight, target_weight)

    # TODO(synk): the torch autograd.Function also stashes dx/dw for backward;
    # the module's forward only returns the loss, which is what we compute.
    # reduction == 'batchmean': sum of per-row KL / N.
    return jnp.sum(per_row) / N


def _reference(x, target_x, weight, target_weight, matmul_dtype=None):
    if matmul_dtype is not None:
        x = x.astype(matmul_dtype)
        target_x = target_x.astype(matmul_dtype)
        weight = weight.astype(matmul_dtype)
        target_weight = target_weight.astype(matmul_dtype)
    s_logits = jnp.dot(x, weight.T, preferred_element_type=jnp.float32)
    t_logits = jnp.dot(target_x, target_weight.T, preferred_element_type=jnp.float32)
    s_logp = jax.nn.log_softmax(s_logits, axis=-1)
    t_logp = jax.nn.log_softmax(t_logits, axis=-1)
    t_p = jnp.exp(t_logp)
    kl = jnp.sum(t_p * (t_logp - s_logp), axis=-1)
    return jnp.sum(kl) / x.shape[0]


if __name__ == "__main__":
    key = jax.random.PRNGKey(0)
    k1, k2, k3, k4 = jax.random.split(key, 4)

    N, H, V = 8, 32, 512   # batch*seq = 8, hidden = 32, vocab = 512

    # Inputs rounded through bf16 so f32 / bf16 MXU paths see identical
    # operand values (keeps the f32-vs-reference check tight regardless of
    # the backend's default matmul precision).
    def _mk(k, shape, scale=1.0):
        v = jax.random.normal(k, shape, dtype=jnp.float32) * scale
        return v.astype(jnp.bfloat16).astype(jnp.float32)

    x = _mk(k1, (N, H))
    target_x = _mk(k2, (N, H))
    weight = _mk(k3, (V, H), 0.1)
    target_weight = _mk(k4, (V, H), 0.1)

    ref_f32 = _reference(x, target_x, weight, target_weight)
    ref_bf16 = _reference(x, target_x, weight, target_weight,
                          matmul_dtype=jnp.bfloat16)

    # 1) Default path: bf16 matmuls (f32 accumulation), large tiles clamped
    #    to the small demo shapes (1 vocab grid step, 4 lane chunks).
    loss_bf16 = jax.block_until_ready(
        fused_kl_div_loss(x, target_x, weight, target_weight))
    assert jnp.allclose(loss_bf16, ref_bf16, rtol=2e-3, atol=2e-3), (loss_bf16, ref_bf16)

    # 2) f32 path, default tiles.
    loss_f32 = jax.block_until_ready(
        fused_kl_div_loss(x, target_x, weight, target_weight, matmul_dtype=None))
    assert jnp.allclose(loss_f32, ref_f32, rtol=1e-4, atol=1e-4), (loss_f32, ref_f32)

    # 3) Multiple vocab grid steps AND multiple lane chunks per step
    #    (exercises the two-pass online accumulation across both levels).
    loss_tiled = jax.block_until_ready(
        fused_kl_div_loss(x, target_x, weight, target_weight,
                          block_n=8, block_v=256, matmul_dtype=None))
    assert jnp.allclose(loss_tiled, ref_f32, rtol=1e-4, atol=1e-4), (loss_tiled, ref_f32)

    # 4) bf16 path with the smallest vocab tile (single lane chunk per step).
    loss_bf16_t = jax.block_until_ready(
        fused_kl_div_loss(x, target_x, weight, target_weight, block_v=128))
    assert jnp.allclose(loss_bf16_t, ref_bf16, rtol=2e-3, atol=2e-3), (loss_bf16_t, ref_bf16)

    print("KERNEL_OK")
</pallas_src>

<mosaic_0001>
module attributes {stable_mosaic.version = 11 : i64} {
  func.func @_kl_div_kernel(%arg0: i32, %arg1: i32, %arg2: memref<8x32xbf16, #tpu.memory_space<vmem>>, %arg3: memref<8x32xbf16, #tpu.memory_space<vmem>>, %arg4: memref<512x32xbf16, #tpu.memory_space<vmem>>, %arg5: memref<512x32xbf16, #tpu.memory_space<vmem>>, %arg6: memref<8x1xf32, #tpu.memory_space<vmem>>, %arg7: memref<8x128xf32, #tpu.memory_space<vmem>>, %arg8: memref<8x128xf32, #tpu.memory_space<vmem>>, %arg9: memref<8x128xf32, #tpu.memory_space<vmem>>, %arg10: memref<8x128xf32, #tpu.memory_space<vmem>>, %arg11: memref<8x128xf32, #tpu.memory_space<vmem>>) attributes {dimension_semantics = [#tpu.dimension_semantics<parallel>, #tpu.dimension_semantics<arbitrary>], iteration_bounds = array<i64: 1, 1>, scalar_prefetch = 0 : i64, scratch_operands = 5 : i64, tpu.core_type = #tpu.core_type<tc>, window_params = [{transform_indices = @transform_0, window_bounds = array<i64: 8, 32>}, {transform_indices = @transform_1, window_bounds = array<i64: 8, 32>}, {transform_indices = @transform_2, window_bounds = array<i64: 512, 32>}, {transform_indices = @transform_3, window_bounds = array<i64: 512, 32>}, {transform_indices = @transform_4, window_bounds = array<i64: 8, 1>}]} {
    %c0_i32 = arith.constant 0 : i32
    %0 = arith.cmpi eq, %arg1, %c0_i32 : i32
    %1 = arith.extui %0 : i1 to i32
    %c0_i32_0 = arith.constant 0 : i32
    %2 = arith.cmpi ne, %1, %c0_i32_0 : i32
    scf.if %2 {
      %cst_31 = arith.constant 0xFF800000 : f32
      %89 = vector.broadcast %cst_31 : f32 to vector<8x128xf32>
      %c0_32 = arith.constant 0 : index
      %c0_33 = arith.constant 0 : index
      %90 = vector.load %arg7[%c0_32, %c0_33] : memref<8x128xf32, #tpu.memory_space<vmem>>, vector<8x128xf32>
      tpu.vector_store %arg7[%c0_32, %c0_33], %89 {strides = array<i32>} : memref<8x128xf32, #tpu.memory_space<vmem>>, vector<8x128xf32>,
      %cst_34 = arith.constant 0xFF800000 : f32
      %91 = vector.broadcast %cst_34 : f32 to vector<8x128xf32>
      %c0_35 = arith.constant 0 : index
      %c0_36 = arith.constant 0 : index
      %92 = vector.load %arg9[%c0_35, %c0_36] : memref<8x128xf32, #tpu.memory_space<vmem>>, vector<8x128xf32>
      tpu.vector_store %arg9[%c0_35, %c0_36], %91 {strides = array<i32>} : memref<8x128xf32, #tpu.memory_space<vmem>>, vector<8x128xf32>,
      %cst_37 = arith.constant 0.000000e+00 : f32
      %93 = vector.broadcast %cst_37 : f32 to vector<8x128xf32>
      %c0_38 = arith.constant 0 : index
      %c0_39 = arith.constant 0 : index
      %94 = vector.load %arg8[%c0_38, %c0_39] : memref<8x128xf32, #tpu.memory_space<vmem>>, vector<8x128xf32>
      tpu.vector_store %arg8[%c0_38, %c0_39], %93 {strides = array<i32>} : memref<8x128xf32, #tpu.memory_space<vmem>>, vector<8x128xf32>,
      %cst_40 = arith.constant 0.000000e+00 : f32
      %95 = vector.broadcast %cst_40 : f32 to vector<8x128xf32>
      %c0_41 = arith.constant 0 : index
      %c0_42 = arith.constant 0 : index
      %96 = vector.load %arg10[%c0_41, %c0_42] : memref<8x128xf32, #tpu.memory_space<vmem>>, vector<8x128xf32>
      tpu.vector_store %arg10[%c0_41, %c0_42], %95 {strides = array<i32>} : memref<8x128xf32, #tpu.memory_space<vmem>>, vector<8x128xf32>,
      %cst_43 = arith.constant 0.000000e+00 : f32
      %97 = vector.broadcast %cst_43 : f32 to vector<8x128xf32>
      %c0_44 = arith.constant 0 : index
      %c0_45 = arith.constant 0 : index
      %98 = vector.load %arg11[%c0_44, %c0_45] : memref<8x128xf32, #tpu.memory_space<vmem>>, vector<8x128xf32>
      tpu.vector_store %arg11[%c0_44, %c0_45], %97 {strides = array<i32>} : memref<8x128xf32, #tpu.memory_space<vmem>>, vector<8x128xf32>,
    } else {
    }
    %c0 = arith.constant 0 : index
    %c0_1 = arith.constant 0 : index
    %3 = vector.load %arg2[%c0, %c0_1] : memref<8x32xbf16, #tpu.memory_space<vmem>>, vector<8x32xbf16>
    %c0_2 = arith.constant 0 : index
    %c0_3 = arith.constant 0 : index
    %4 = vector.load %arg3[%c0_2, %c0_3] : memref<8x32xbf16, #tpu.memory_space<vmem>>, vector<8x32xbf16>
    %c0_4 = arith.constant 0 : index
    %c0_5 = arith.constant 0 : index
    %5 = vector.load %arg4[%c0_4, %c0_5] : memref<512x32xbf16, #tpu.memory_space<vmem>>, vector<512x32xbf16>
    %c0_6 = arith.constant 0 : index
    %c0_7 = arith.constant 0 : index
    %6 = vector.load %arg5[%c0_6, %c0_7] : memref<512x32xbf16, #tpu.memory_space<vmem>>, vector<512x32xbf16>
    %cst = arith.constant dense<0.000000e+00> : vector<8x512xf32>
    %7 = tpu.matmul %3, %5, %cst {dimension_numbers = #tpu.dot_dimension_numbers<[1], [1], [0], [0], [0, 0, 1, 0], [], []>} : vector<8x32xbf16>, vector<512x32xbf16>, vector<8x512xf32> -> vector<8x512xf32>
    %cst_8 = arith.constant dense<0.000000e+00> : vector<8x512xf32>
    %8 = tpu.matmul %4, %6, %cst_8 {dimension_numbers = #tpu.dot_dimension_numbers<[1], [1], [0], [0], [0, 0, 1, 0], [], []>} : vector<8x32xbf16>, vector<512x32xbf16>, vector<8x512xf32> -> vector<8x512xf32>
    %9 = vector.extract_strided_slice %7 {offsets = [0, 0], sizes = [8, 128], strides = [1, 1]} : vector<8x512xf32> to vector<8x128xf32>
    %10 = vector.extract_strided_slice %8 {offsets = [0, 0], sizes = [8, 128], strides = [1, 1]} : vector<8x512xf32> to vector<8x128xf32>
    %11 = vector.extract_strided_slice %7 {offsets = [0, 128], sizes = [8, 128], strides = [1, 1]} : vector<8x512xf32> to vector<8x128xf32>
    %12 = arith.maximumf %9, %11 : vector<8x128xf32>
    %13 = vector.extract_strided_slice %8 {offsets = [0, 128], sizes = [8, 128], strides = [1, 1]} : vector<8x512xf32> to vector<8x128xf32>
    %14 = arith.maximumf %10, %13 : vector<8x128xf32>
    %15 = vector.extract_strided_slice %7 {offsets = [0, 256], sizes = [8, 128], strides = [1, 1]} : vector<8x512xf32> to vector<8x128xf32>
    %16 = arith.maximumf %12, %15 : vector<8x128xf32>
    %17 = vector.extract_strided_slice %8 {offsets = [0, 256], sizes = [8, 128], strides = [1, 1]} : vector<8x512xf32> to vector<8x128xf32>
    %18 = arith.maximumf %14, %17 : vector<8x128xf32>
    %19 = vector.extract_strided_slice %7 {offsets = [0, 384], sizes = [8, 128], strides = [1, 1]} : vector<8x512xf32> to vector<8x128xf32>
    %20 = arith.maximumf %16, %19 : vector<8x128xf32>
    %21 = vector.extract_strided_slice %8 {offsets = [0, 384], sizes = [8, 128], strides = [1, 1]} : vector<8x512xf32> to vector<8x128xf32>
    %22 = arith.maximumf %18, %21 : vector<8x128xf32>
    %c0_9 = arith.constant 0 : index
    %c0_10 = arith.constant 0 : index
    %23 = vector.load %arg7[%c0_9, %c0_10] : memref<8x128xf32, #tpu.memory_space<vmem>>, vector<8x128xf32>
    %c0_11 = arith.constant 0 : index
    %c0_12 = arith.constant 0 : index
    %24 = vector.load %arg9[%c0_11, %c0_12] : memref<8x128xf32, #tpu.memory_space<vmem>>, vector<8x128xf32>
    %25 = arith.maximumf %23, %20 : vector<8x128xf32>
    %26 = arith.maximumf %24, %22 : vector<8x128xf32>
    %27 = arith.subf %23, %25 : vector<8x128xf32>
    %28 = math.exp %27 : vector<8x128xf32>
    %29 = arith.subf %24, %26 : vector<8x128xf32>
    %30 = math.exp %29 : vector<8x128xf32>
    %c0_13 = arith.constant 0 : index
    %c0_14 = arith.constant 0 : index
    %31 = vector.load %arg8[%c0_13, %c0_14] : memref<8x128xf32, #tpu.memory_space<vmem>>, vector<8x128xf32>
    %32 = arith.mulf %31, %28 : vector<8x128xf32>
    %c0_15 = arith.constant 0 : index
    %c0_16 = arith.constant 0 : index
    %33 = vector.load %arg10[%c0_15, %c0_16] : memref<8x128xf32, #tpu.memory_space<vmem>>, vector<8x128xf32>
    %34 = arith.mulf %33, %30 : vector<8x128xf32>
    %c0_17 = arith.constant 0 : index
    %c0_18 = arith.constant 0 : index
    %35 = vector.load %arg11[%c0_17, %c0_18] : memref<8x128xf32, #tpu.memory_space<vmem>>, vector<8x128xf32>
    %36 = arith.mulf %35, %30 : vector<8x128xf32>
    %37 = vector.extract_strided_slice %7 {offsets = [0, 0], sizes = [8, 128], strides = [1, 1]} : vector<8x512xf32> to vector<8x128xf32>
    %38 = vector.extract_strided_slice %8 {offsets = [0, 0], sizes = [8, 128], strides = [1, 1]} : vector<8x512xf32> to vector<8x128xf32>
    %39 = arith.subf %37, %25 : vector<8x128xf32>
    %40 = math.exp %39 : vector<8x128xf32>
    %41 = arith.addf %32, %40 : vector<8x128xf32>
    %42 = arith.subf %38, %26 : vector<8x128xf32>
    %43 = math.exp %42 : vector<8x128xf32>
    %44 = arith.addf %34, %43 : vector<8x128xf32>
    %45 = arith.subf %38, %37 : vector<8x128xf32>
    %46 = arith.mulf %43, %45 : vector<8x128xf32>
    %47 = arith.addf %36, %46 : vector<8x128xf32>
    %48 = vector.extract_strided_slice %7 {offsets = [0, 128], sizes = [8, 128], strides = [1, 1]} : vector<8x512xf32> to vector<8x128xf32>
    %49 = vector.extract_strided_slice %8 {offsets = [0, 128], sizes = [8, 128], strides = [1, 1]} : vector<8x512xf32> to vector<8x128xf32>
    %50 = arith.subf %48, %25 : vector<8x128xf32>
    %51 = math.exp %50 : vector<8x128xf32>
    %52 = arith.addf %41, %51 : vector<8x128xf32>
    %53 = arith.subf %49, %26 : vector<8x128xf32>
    %54 = math.exp %53 : vector<8x128xf32>
    %55 = arith.addf %44, %54 : vector<8x128xf32>
    %56 = arith.subf %49, %48 : vector<8x128xf32>
    %57 = arith.mulf %54, %56 : vector<8x128xf32>
    %58 = arith.addf %47, %57 : vector<8x128xf32>
    %59 = vector.extract_strided_slice %7 {offsets = [0, 256], sizes = [8, 128], strides = [1, 1]} : vector<8x512xf32> to vector<8x128xf32>
    %60 = vector.extract_strided_slice %8 {offsets = [0, 256], sizes = [8, 128], strides = [1, 1]} : vector<8x512xf32> to vector<8x128xf32>
    %61 = arith.subf %59, %25 : vector<8x128xf32>
    %62 = math.exp %61 : vector<8x128xf32>
    %63 = arith.addf %52, %62 : vector<8x128xf32>
    %64 = arith.subf %60, %26 : vector<8x128xf32>
    %65 = math.exp %64 : vector<8x128xf32>
    %66 = arith.addf %55, %65 : vector<8x128xf32>
    %67 = arith.subf %60, %59 : vector<8x128xf32>
    %68 = arith.mulf %65, %67 : vector<8x128xf32>
    %69 = arith.addf %58, %68 : vector<8x128xf32>
    %70 = vector.extract_strided_slice %7 {offsets = [0, 384], sizes = [8, 128], strides = [1, 1]} : vector<8x512xf32> to vector<8x128xf32>
    %71 = vector.extract_strided_slice %8 {offsets = [0, 384], sizes = [8, 128], strides = [1, 1]} : vector<8x512xf32> to vector<8x128xf32>
    %72 = arith.subf %70, %25 : vector<8x128xf32>
    %73 = math.exp %72 : vector<8x128xf32>
    %74 = arith.addf %63, %73 : vector<8x128xf32>
    %75 = arith.subf %71, %26 : vector<8x128xf32>
    %76 = math.exp %75 : vector<8x128xf32>
    %77 = arith.addf %66, %76 : vector<8x128xf32>
    %78 = arith.subf %71, %70 : vector<8x128xf32>
    %79 = arith.mulf %76, %78 : vector<8x128xf32>
    %80 = arith.addf %69, %79 : vector<8x128xf32>
    %c0_19 = arith.constant 0 : index
    %c0_20 = arith.constant 0 : index
    %81 = vector.load %arg7[%c0_19, %c0_20] : memref<8x128xf32, #tpu.memory_space<vmem>>, vector<8x128xf32>
    tpu.vector_store %arg7[%c0_19, %c0_20], %25 {strides = array<i32>} : memref<8x128xf32, #tpu.memory_space<vmem>>, vector<8x128xf32>,
    %c0_21 = arith.constant 0 : index
    %c0_22 = arith.constant 0 : index
    %82 = vector.load %arg9[%c0_21, %c0_22] : memref<8x128xf32, #tpu.memory_space<vmem>>, vector<8x128xf32>
    tpu.vector_store %arg9[%c0_21, %c0_22], %26 {strides = array<i32>} : memref<8x128xf32, #tpu.memory_space<vmem>>, vector<8x128xf32>,
    %c0_23 = arith.constant 0 : index
    %c0_24 = arith.constant 0 : index
    %83 = vector.load %arg8[%c0_23, %c0_24] : memref<8x128xf32, #tpu.memory_space<vmem>>, vector<8x128xf32>
    tpu.vector_store %arg8[%c0_23, %c0_24], %74 {strides = array<i32>} : memref<8x128xf32, #tpu.memory_space<vmem>>, vector<8x128xf32>,
    %c0_25 = arith.constant 0 : index
    %c0_26 = arith.constant 0 : index
    %84 = vector.load %arg10[%c0_25, %c0_26] : memref<8x128xf32, #tpu.memory_space<vmem>>, vector<8x128xf32>
    tpu.vector_store %arg10[%c0_25, %c0_26], %77 {strides = array<i32>} : memref<8x128xf32, #tpu.memory_space<vmem>>, vector<8x128xf32>,
    %c0_27 = arith.constant 0 : index
    %c0_28 = arith.constant 0 : index
    %85 = vector.load %arg11[%c0_27, %c0_28] : memref<8x128xf32, #tpu.memory_space<vmem>>, vector<8x128xf32>
    tpu.vector_store %arg11[%c0_27, %c0_28], %80 {strides = array<i32>} : memref<8x128xf32, #tpu.memory_space<vmem>>, vector<8x128xf32>,
    %c0_i32_29 = arith.constant 0 : i32
    %86 = arith.cmpi eq, %arg1, %c0_i32_29 : i32
    %87 = arith.extui %86 : i1 to i32
    %c0_i32_30 = arith.constant 0 : i32
    %88 = arith.cmpi ne, %87, %c0_i32_30 : i32
    scf.if %88 {
      %cst_31 = arith.constant dense<0xFF800000> : vector<8xf32>
      %89 = vector.multi_reduction <maximumf>, %25, %cst_31 [1] : vector<8x128xf32> to vector<8xf32>
      %90 = vector.shape_cast %89 : vector<8xf32> to vector<8x1xf32>
      %91 = vector.broadcast %90 : vector<8x1xf32> to vector<8x128xf32>
      %92 = arith.subf %25, %91 : vector<8x128xf32>
      %93 = math.exp %92 : vector<8x128xf32>
      %94 = arith.mulf %74, %93 : vector<8x128xf32>
      %cst_32 = arith.constant dense<0.000000e+00> : vector<8xf32>
      %95 = vector.multi_reduction <add>, %94, %cst_32 [1] : vector<8x128xf32> to vector<8xf32>
      %96 = vector.shape_cast %95 : vector<8xf32> to vector<8x1xf32>
      %cst_33 = arith.constant dense<0xFF800000> : vector<8xf32>
      %97 = vector.multi_reduction <maximumf>, %26, %cst_33 [1] : vector<8x128xf32> to vector<8xf32>
      %98 = vector.shape_cast %97 : vector<8xf32> to vector<8x1xf32>
      %99 = vector.broadcast %98 : vector<8x1xf32> to vector<8x128xf32>
      %100 = arith.subf %26, %99 : vector<8x128xf32>
      %101 = math.exp %100 : vector<8x128xf32>
      %102 = arith.mulf %77, %101 : vector<8x128xf32>
      %cst_34 = arith.constant dense<0.000000e+00> : vector<8xf32>
      %103 = vector.multi_reduction <add>, %102, %cst_34 [1] : vector<8x128xf32> to vector<8xf32>
      %104 = vector.shape_cast %103 : vector<8xf32> to vector<8x1xf32>
      %105 = arith.mulf %80, %101 : vector<8x128xf32>
      %cst_35 = arith.constant dense<0.000000e+00> : vector<8xf32>
      %106 = vector.multi_reduction <add>, %105, %cst_35 [1] : vector<8x128xf32> to vector<8xf32>
      %107 = vector.shape_cast %106 : vector<8xf32> to vector<8x1xf32>
      %108 = math.log %96 : vector<8x1xf32>
      %109 = arith.addf %90, %108 : vector<8x1xf32>
      %110 = math.log %104 : vector<8x1xf32>
      %111 = arith.addf %98, %110 : vector<8x1xf32>
      %112 = arith.divf %107, %104 : vector<8x1xf32>
      %113 = arith.subf %109, %111 : vector<8x1xf32>
      %114 = arith.addf %112, %113 : vector<8x1xf32>
      %c0_36 = arith.constant 0 : index
      %c0_37 = arith.constant 0 : index
      %115 = vector.load %arg6[%c0_36, %c0_37] : memref<8x1xf32, #tpu.memory_space<vmem>>, vector<8x1xf32>
      tpu.vector_store %arg6[%c0_36, %c0_37], %114 {strides = array<i32>} : memref<8x1xf32, #tpu.memory_space<vmem>>, vector<8x1xf32>,
    } else {
    }
    return
  }
  func.func @transform_0(%arg0: i32, %arg1: i32) -> (i32, i32) {
    %c0_i32 = arith.constant 0 : i32
    %c0_i32_0 = arith.constant 0 : i32
    return %arg0, %c0_i32 : i32, i32
  }
  func.func @transform_1(%arg0: i32, %arg1: i32) -> (i32, i32) {
    %c0_i32 = arith.constant 0 : i32
    %c0_i32_0 = arith.constant 0 : i32
    return %arg0, %c0_i32 : i32, i32
  }
  func.func @transform_2(%arg0: i32, %arg1: i32) -> (i32, i32) {
    %c0_i32 = arith.constant 0 : i32
    %c0_i32_0 = arith.constant 0 : i32
    return %arg1, %c0_i32 : i32, i32
  }
  func.func @transform_3(%arg0: i32, %arg1: i32) -> (i32, i32) {
    %c0_i32 = arith.constant 0 : i32
    %c0_i32_0 = arith.constant 0 : i32
    return %arg1, %c0_i32 : i32, i32
  }
  func.func @transform_4(%arg0: i32, %arg1: i32) -> (i32, i32) {
    %c0_i32 = arith.constant 0 : i32
    %c0_i32_0 = arith.constant 0 : i32
    return %arg0, %c0_i32 : i32, i32
  }
}

</mosaic_0001>

<llo_original>
// kernel: fused_kl_div_loss.1
$region0: #{fused_kl_div_loss.1}
  #allocation0 [shape = 'u32[]', space=smem, size = 0x4, offset = 0x4, fixed_abs, tag = 'smem constant byte address 0x4 - core index']
  #allocation1 [shape = 'u32[144,128]{1,0:T(1,128)}', space=vmem, size = 0x12000, scoped, tag = 'internal scratch']
  #allocation2 [shape = 'f32[8,128]{1,0:T(8,128)}', space=vmem, size = 0x1000, scoped, tag = 'scratch operand']
  #allocation3 [shape = 'f32[8,128]{1,0:T(8,128)}', space=vmem, size = 0x1000, scoped, tag = 'scratch operand']
  #allocation4 [shape = 'f32[8,128]{1,0:T(8,128)}', space=vmem, size = 0x1000, scoped, tag = 'scratch operand']
  #allocation5 [shape = 'f32[8,128]{1,0:T(8,128)}', space=vmem, size = 0x1000, scoped, tag = 'scratch operand']
  #allocation6 [shape = 'f32[8,128]{1,0:T(8,128)}', space=vmem, size = 0x1000, scoped, tag = 'scratch operand']
  %s0 = inlined_call_operand.vmem [shape: bf16[8,32], index: 0, kind: input, shape index: {}]
  %s1 = inlined_call_operand.vmem [shape: bf16[8,32], index: 1, kind: input, shape index: {}]
  %s2 = inlined_call_operand.vmem [shape: bf16[512,32], index: 2, kind: input, shape index: {}]
  %s3 = inlined_call_operand.vmem [shape: bf16[512,32], index: 3, kind: input, shape index: {}]
  %s4 = inlined_call_operand.vmem [shape: f32[8,1], index: 4, kind: output, shape index: {}]
  %s5 = sld [smem:[#allocation0]]
  $region34: #{fused_kl_div_loss.1} parent=0
    _
  %s7 = ssub.s32 1, %s5
  %s8 = scalar_select 0, %s7, %s5
  // Predicated region
  $region2: #{fused_kl_div_loss.1} parent=0 // pred_check
    _
  $region3: #{fused_kl_div_loss.1} parent=0 // pred_check_branch
    %10 = sbr.rel (0) target = $region5
  $region4: #{fused_kl_div_loss.1} parent=0 // pred_region
    _
  $region5: #{fused_kl_div_loss.1} parent=0 // pred_fallthru
    _
  // Predicated region
  $region6: #{fused_kl_div_loss.1} parent=0 // pred_check
    _
  $region7: #{fused_kl_div_loss.1} parent=0 // pred_check_branch
    %12 = sbr.rel (0) target = $region9
  $region8: #{fused_kl_div_loss.1} parent=0 // pred_region
    _
  $region9: #{fused_kl_div_loss.1} parent=0 // pred_fallthru
    _
  // Predicated region
  $region10: #{fused_kl_div_loss.1} parent=0 // pred_check
    _
  $region11: #{fused_kl_div_loss.1} parent=0 // pred_check_branch
    %14 = sbr.rel (0) target = $region13
  $region12: #{fused_kl_div_loss.1} parent=0 // pred_region
    _
  $region13: #{fused_kl_div_loss.1} parent=0 // pred_fallthru
    _
  // Predicated region
  $region14: #{fused_kl_div_loss.1} parent=0 // pred_check
    _
  $region15: #{fused_kl_div_loss.1} parent=0 // pred_check_branch
    %16 = sbr.rel (0) target = $region17
  $region16: #{fused_kl_div_loss.1} parent=0 // pred_region
    _
  $region17: #{fused_kl_div_loss.1} parent=0 // pred_fallthru
    _
  %p18 = scmp.eq.s32.totalorder 0, 0
  // Predicated region
  $region18: #{fused_kl_div_loss.1} parent=0 // pred_check
    %p19 = pneg %p18
  $region19: #{fused_kl_div_loss.1} parent=0 // pred_check_branch
    %21 = sbr.rel (%p19) target = $region21
  $region20: #{fused_kl_div_loss.1} parent=0 // pred_region
    %22 = vst [vmem:[#allocation2] sm:$0xff] -inf
    %23 = vst [vmem:[#allocation4] sm:$0xff] -inf
    %24 = vst [vmem:[#allocation3] sm:$0xff] 0.0
    %25 = vst [vmem:[#allocation5] sm:$0xff] 0.0
    %26 = vst [vmem:[#allocation6] sm:$0xff] 0.0
  $region21: #{fused_kl_div_loss.1} parent=0 // pred_fallthru
    _
  %v27 = vld [vmem:[%s0] sm:$0xf]
  %v28 = vld [vmem:[%s1] sm:$0xf]
  %v29 = vld [vmem:[%s2] sm:$0xf]
  %v30 = vld [vmem:[%s2 + $0x4] sm:$0xf]
  %v31 = vld [vmem:[%s2 + $0x8] sm:$0xf]
  %v32 = vld [vmem:[%s2 + $0xc] sm:$0xf]
  %v33 = vld [vmem:[%s2 + $0x10] sm:$0xf]
  %v34 = vld [vmem:[%s2 + $0x14] sm:$0xf]
  %v35 = vld [vmem:[%s2 + $0x18] sm:$0xf]
  %v36 = vld [vmem:[%s2 + $0x1c] sm:$0xf]
  %v37 = vld [vmem:[%s2 + $0x20] sm:$0xf]
  %v38 = vld [vmem:[%s2 + $0x24] sm:$0xf]
  %v39 = vld [vmem:[%s2 + $0x28] sm:$0xf]
  %v40 = vld [vmem:[%s2 + $0x2c] sm:$0xf]
  %v41 = vld [vmem:[%s2 + $0x30] sm:$0xf]
  %v42 = vld [vmem:[%s2 + $0x34] sm:$0xf]
  %v43 = vld [vmem:[%s2 + $0x38] sm:$0xf]
  %v44 = vld [vmem:[%s2 + $0x3c] sm:$0xf]
  %v45 = vld [vmem:[%s2 + $0x40] sm:$0xf]
  %v46 = vld [vmem:[%s2 + $0x44] sm:$0xf]
  %v47 = vld [vmem:[%s2 + $0x48] sm:$0xf]
  %v48 = vld [vmem:[%s2 + $0x4c] sm:$0xf]
  %v49 = vld [vmem:[%s2 + $0x50] sm:$0xf]
  %v50 = vld [vmem:[%s2 + $0x54] sm:$0xf]
  %v51 = vld [vmem:[%s2 + $0x58] sm:$0xf]
  %v52 = vld [vmem:[%s2 + $0x5c] sm:$0xf]
  %v53 = vld [vmem:[%s2 + $0x60] sm:$0xf]
  %v54 = vld [vmem:[%s2 + $0x64] sm:$0xf]
  %v55 = vld [vmem:[%s2 + $0x68] sm:$0xf]
  %v56 = vld [vmem:[%s2 + $0x6c] sm:$0xf]
  %v57 = vld [vmem:[%s2 + $0x70] sm:$0xf]
  %v58 = vld [vmem:[%s2 + $0x74] sm:$0xf]
  %v59 = vld [vmem:[%s2 + $0x78] sm:$0xf]
  %v60 = vld [vmem:[%s2 + $0x7c] sm:$0xf]
  %v61 = vld [vmem:[%s2 + $0x80] sm:$0xf]
  %v62 = vld [vmem:[%s2 + $0x84] sm:$0xf]
  %v63 = vld [vmem:[%s2 + $0x88] sm:$0xf]
  %v64 = vld [vmem:[%s2 + $0x8c] sm:$0xf]
  %v65 = vld [vmem:[%s2 + $0x90] sm:$0xf]
  %v66 = vld [vmem:[%s2 + $0x94] sm:$0xf]
  %v67 = vld [vmem:[%s2 + $0x98] sm:$0xf]
  %v68 = vld [vmem:[%s2 + $0x9c] sm:$0xf]
  %v69 = vld [vmem:[%s2 + $0xa0] sm:$0xf]
  %v70 = vld [vmem:[%s2 + $0xa4] sm:$0xf]
  %v71 = vld [vmem:[%s2 + $0xa8] sm:$0xf]
  %v72 = vld [vmem:[%s2 + $0xac] sm:$0xf]
  %v73 = vld [vmem:[%s2 + $0xb0] sm:$0xf]
  %v74 = vld [vmem:[%s2 + $0xb4] sm:$0xf]
  %v75 = vld [vmem:[%s2 + $0xb8] sm:$0xf]
  %v76 = vld [vmem:[%s2 + $0xbc] sm:$0xf]
  %v77 = vld [vmem:[%s2 + $0xc0] sm:$0xf]
  %v78 = vld [vmem:[%s2 + $0xc4] sm:$0xf]
  %v79 = vld [vmem:[%s2 + $0xc8] sm:$0xf]
  %v80 = vld [vmem:[%s2 + $0xcc] sm:$0xf]
  %v81 = vld [vmem:[%s2 + $0xd0] sm:$0xf]
  %v82 = vld [vmem:[%s2 + $0xd4] sm:$0xf]
  %v83 = vld [vmem:[%s2 + $0xd8] sm:$0xf]
  %v84 = vld [vmem:[%s2 + $0xdc] sm:$0xf]
  %v85 = vld [vmem:[%s2 + $0xe0] sm:$0xf]
  %v86 = vld [vmem:[%s2 + $0xe4] sm:$0xf]
  %v87 = vld [vmem:[%s2 + $0xe8] sm:$0xf]
  %v88 = vld [vmem:[%s2 + $0xec] sm:$0xf]
  %v89 = vld [vmem:[%s2 + $0xf0] sm:$0xf]
  %v90 = vld [vmem:[%s2 + $0xf4] sm:$0xf]
  %v91 = vld [vmem:[%s2 + $0xf8] sm:$0xf]
  %v92 = vld [vmem:[%s2 + $0xfc] sm:$0xf]
  %v93 = vld [vmem:[%s3] sm:$0xf]
  %v94 = vld [vmem:[%s3 + $0x4] sm:$0xf]
  %v95 = vld [vmem:[%s3 + $0x8] sm:$0xf]
  %v96 = vld [vmem:[%s3 + $0xc] sm:$0xf]
  %v97 = vld [vmem:[%s3 + $0x10] sm:$0xf]
  %v98 = vld [vmem:[%s3 + $0x14] sm:$0xf]
  %v99 = vld [vmem:[%s3 + $0x18] sm:$0xf]
  %v100 = vld [vmem:[%s3 + $0x1c] sm:$0xf]
  %v101 = vld [vmem:[%s3 + $0x20] sm:$0xf]
  %v102 = vld [vmem:[%s3 + $0x24] sm:$0xf]
  %v103 = vld [vmem:[%s3 + $0x28] sm:$0xf]
  %v104 = vld [vmem:[%s3 + $0x2c] sm:$0xf]
  %v105 = vld [vmem:[%s3 + $0x30] sm:$0xf]
  %v106 = vld [vmem:[%s3 + $0x34] sm:$0xf]
  %v107 = vld [vmem:[%s3 + $0x38] sm:$0xf]
  %v108 = vld [vmem:[%s3 + $0x3c] sm:$0xf]
  %v109 = vld [vmem:[%s3 + $0x40] sm:$0xf]
  %v110 = vld [vmem:[%s3 + $0x44] sm:$0xf]
  %v111 = vld [vmem:[%s3 + $0x48] sm:$0xf]
  %v112 = vld [vmem:[%s3 + $0x4c] sm:$0xf]
  %v113 = vld [vmem:[%s3 + $0x50] sm:$0xf]
  %v114 = vld [vmem:[%s3 + $0x54] sm:$0xf]
  %v115 = vld [vmem:[%s3 + $0x58] sm:$0xf]
  %v116 = vld [vmem:[%s3 + $0x5c] sm:$0xf]
  %v117 = vld [vmem:[%s3 + $0x60] sm:$0xf]
  %v118 = vld [vmem:[%s3 + $0x64] sm:$0xf]
  %v119 = vld [vmem:[%s3 + $0x68] sm:$0xf]
  %v120 = vld [vmem:[%s3 + $0x6c] sm:$0xf]
  %v121 = vld [vmem:[%s3 + $0x70] sm:$0xf]
  %v122 = vld [vmem:[%s3 + $0x74] sm:$0xf]
  %v123 = vld [vmem:[%s3 + $0x78] sm:$0xf]
  %v124 = vld [vmem:[%s3 + $0x7c] sm:$0xf]
  %v125 = vld [vmem:[%s3 + $0x80] sm:$0xf]
  %v126 = vld [vmem:[%s3 + $0x84] sm:$0xf]
  %v127 = vld [vmem:[%s3 + $0x88] sm:$0xf]
  %v128 = vld [vmem:[%s3 + $0x8c] sm:$0xf]
  %v129 = vld [vmem:[%s3 + $0x90] sm:$0xf]
  %v130 = vld [vmem:[%s3 + $0x94] sm:$0xf]
  %v131 = vld [vmem:[%s3 + $0x98] sm:$0xf]
  %v132 = vld [vmem:[%s3 + $0x9c] sm:$0xf]
  %v133 = vld [vmem:[%s3 + $0xa0] sm:$0xf]
  %v134 = vld [vmem:[%s3 + $0xa4] sm:$0xf]
  %v135 = vld [vmem:[%s3 + $0xa8] sm:$0xf]
  %v136 = vld [vmem:[%s3 + $0xac] sm:$0xf]
  %v137 = vld [vmem:[%s3 + $0xb0] sm:$0xf]
  %v138 = vld [vmem:[%s3 + $0xb4] sm:$0xf]
  %v139 = vld [vmem:[%s3 + $0xb8] sm:$0xf]
  %v140 = vld [vmem:[%s3 + $0xbc] sm:$0xf]
  %v141 = vld [vmem:[%s3 + $0xc0] sm:$0xf]
  %v142 = vld [vmem:[%s3 + $0xc4] sm:$0xf]
  %v143 = vld [vmem:[%s3 + $0xc8] sm:$0xf]
  %v144 = vld [vmem:[%s3 + $0xcc] sm:$0xf]
  %v145 = vld [vmem:[%s3 + $0xd0] sm:$0xf]
  %v146 = vld [vmem:[%s3 + $0xd4] sm:$0xf]
  %v147 = vld [vmem:[%s3 + $0xd8] sm:$0xf]
  %v148 = vld [vmem:[%s3 + $0xdc] sm:$0xf]
  %v149 = vld [vmem:[%s3 + $0xe0] sm:$0xf]
  %v150 = vld [vmem:[%s3 + $0xe4] sm:$0xf]
  %v151 = vld [vmem:[%s3 + $0xe8] sm:$0xf]
  %v152 = vld [vmem:[%s3 + $0xec] sm:$0xf]
  %v153 = vld [vmem:[%s3 + $0xf0] sm:$0xf]
  %v154 = vld [vmem:[%s3 + $0xf4] sm:$0xf]
  %v155 = vld [vmem:[%s3 + $0xf8] sm:$0xf]
  %v156 = vld [vmem:[%s3 + $0xfc] sm:$0xf]
  %v221 = vunpack.c.l.b16 %v29
  %v222 = vunpack.c.l.b16 %v30
  %v223 = vunpack.c.l.b16 %v31
  %v224 = vunpack.c.l.b16 %v32
  %v225 = vunpack.c.l.b16 %v33
  %v226 = vunpack.c.l.b16 %v34
  %v227 = vunpack.c.l.b16 %v35
  %v228 = vunpack.c.l.b16 %v36
  %v229 = vunpack.c.l.b16 %v37
  %v230 = vunpack.c.l.b16 %v38
  %v231 = vunpack.c.l.b16 %v39
  %v232 = vunpack.c.l.b16 %v40
  %v233 = vunpack.c.l.b16 %v41
  %v234 = vunpack.c.l.b16 %v42
  %v235 = vunpack.c.l.b16 %v43
  %v236 = vunpack.c.l.b16 %v44
  %v237 = vunpack.c.l.b16 %v45
  %v238 = vunpack.c.l.b16 %v46
  %v239 = vunpack.c.l.b16 %v47
  %v240 = vunpack.c.l.b16 %v48
  %v241 = vunpack.c.l.b16 %v49
  %v242 = vunpack.c.l.b16 %v50
  %v243 = vunpack.c.l.b16 %v51
  %v244 = vunpack.c.l.b16 %v52
  %v245 = vunpack.c.l.b16 %v53
  %v246 = vunpack.c.l.b16 %v54
  %v247 = vunpack.c.l.b16 %v55
  %v248 = vunpack.c.l.b16 %v56
  %v249 = vunpack.c.l.b16 %v57
  %v250 = vunpack.c.l.b16 %v58
  %v251 = vunpack.c.l.b16 %v59
  %v252 = vunpack.c.l.b16 %v60
  %v253 = vunpack.c.l.b16 %v61
  %v254 = vunpack.c.l.b16 %v62
  %v255 = vunpack.c.l.b16 %v63
  %v256 = vunpack.c.l.b16 %v64
  %v257 = vunpack.c.l.b16 %v65
  %v258 = vunpack.c.l.b16 %v66
  %v259 = vunpack.c.l.b16 %v67
  %v260 = vunpack.c.l.b16 %v68
  %v261 = vunpack.c.l.b16 %v69
  %v262 = vunpack.c.l.b16 %v70
  %v263 = vunpack.c.l.b16 %v71
  %v264 = vunpack.c.l.b16 %v72
  %v265 = vunpack.c.l.b16 %v73
  %v266 = vunpack.c.l.b16 %v74
  %v267 = vunpack.c.l.b16 %v75
  %v268 = vunpack.c.l.b16 %v76
  %v269 = vunpack.c.l.b16 %v77
  %v270 = vunpack.c.l.b16 %v78
  %v271 = vunpack.c.l.b16 %v79
  %v272 = vunpack.c.l.b16 %v80
  %v273 = vunpack.c.l.b16 %v81
  %v274 = vunpack.c.l.b16 %v82
  %v275 = vunpack.c.l.b16 %v83
  %v276 = vunpack.c.l.b16 %v84
  %v277 = vunpack.c.l.b16 %v85
  %v278 = vunpack.c.l.b16 %v86
  %v279 = vunpack.c.l.b16 %v87
  %v280 = vunpack.c.l.b16 %v88
  %v281 = vunpack.c.l.b16 %v89
  %v282 = vunpack.c.l.b16 %v90
  %v283 = vunpack.c.l.b16 %v91
  %v284 = vunpack.c.l.b16 %v92
  %v285 = vpack.c.b16 %v222, %v221
  %v286 = vpack.c.b16 %v224, %v223
  %v287 = vpack.c.b16 %v226, %v225
  %v288 = vpack.c.b16 %v228, %v227
  %v289 = vpack.c.b16 %v230, %v229
  %v290 = vpack.c.b16 %v232, %v231
  %v291 = vpack.c.b16 %v234, %v233
  %v292 = vpack.c.b16 %v236, %v235
  %v293 = vpack.c.b16 %v238, %v237
  %v294 = vpack.c.b16 %v240, %v239
  %v295 = vpack.c.b16 %v242, %v241
  %v296 = vpack.c.b16 %v244, %v243
  %v297 = vpack.c.b16 %v246, %v245
  %v298 = vpack.c.b16 %v248, %v247
  %v299 = vpack.c.b16 %v250, %v249
  %v300 = vpack.c.b16 %v252, %v251
  %v301 = vpack.c.b16 %v254, %v253
  %v302 = vpack.c.b16 %v256, %v255
  %v303 = vpack.c.b16 %v258, %v257
  %v304 = vpack.c.b16 %v260, %v259
  %v305 = vpack.c.b16 %v262, %v261
  %v306 = vpack.c.b16 %v264, %v263
  %v307 = vpack.c.b16 %v266, %v265
  %v308 = vpack.c.b16 %v268, %v267
  %v309 = vpack.c.b16 %v270, %v269
  %v310 = vpack.c.b16 %v272, %v271
  %v311 = vpack.c.b16 %v274, %v273
  %v312 = vpack.c.b16 %v276, %v275
  %v313 = vpack.c.b16 %v278, %v277
  %v314 = vpack.c.b16 %v280, %v279
  %v315 = vpack.c.b16 %v282, %v281
  %v316 = vpack.c.b16 %v284, %v283
  %vm317 = vcmask 261120
  %v319 = vsel %vm317, %v27, 0
  %v322 = vsel %vm317, %v285, 0
  %v325 = vsel %vm317, %v286, 0
  %v328 = vsel %vm317, %v287, 0
  %v331 = vsel %vm317, %v288, 0
  %v334 = vsel %vm317, %v289, 0
  %v337 = vsel %vm317, %v290, 0
  %v340 = vsel %vm317, %v291, 0
  %v343 = vsel %vm317, %v292, 0
  %v346 = vsel %vm317, %v293, 0
  %v349 = vsel %vm317, %v294, 0
  %v352 = vsel %vm317, %v295, 0
  %v355 = vsel %vm317, %v296, 0
  %v358 = vsel %vm317, %v297, 0
  %v361 = vsel %vm317, %v298, 0
  %v364 = vsel %vm317, %v299, 0
  %v367 = vsel %vm317, %v300, 0
  %v370 = vsel %vm317, %v301, 0
  %v373 = vsel %vm317, %v302, 0
  %v376 = vsel %vm317, %v303, 0
  %v379 = vsel %vm317, %v304, 0
  %v382 = vsel %vm317, %v305, 0
  %v385 = vsel %vm317, %v306, 0
  %v388 = vsel %vm317, %v307, 0
  %v391 = vsel %vm317, %v308, 0
  %v394 = vsel %vm317, %v309, 0
  %v397 = vsel %vm317, %v310, 0
  %v400 = vsel %vm317, %v311, 0
  %v403 = vsel %vm317, %v312, 0
  %v406 = vsel %vm317, %v313, 0
  %v409 = vsel %vm317, %v314, 0
  %v412 = vsel %vm317, %v315, 0
  %v415 = vsel %vm317, %v316, 0
  %417 = vmatprep.subr.bf16.mxu0 0
  %418 = vmatpush1.bf16.xpose.msra.mxu0 %v322
  %419 = vmatprep.subr.bf16.mxu0 0
  %420 = vmatpush1.bf16.xpose.msra.mxu0 %v325
  %421 = vmatprep.subr.bf16.mxu0 0
  %422 = vmatpush1.bf16.xpose.msra.mxu0 %v328
  %423 = vmatprep.subr.bf16.mxu0 0
  %424 = vmatpush1.bf16.xpose.msra.mxu0 %v331
  %425 = vmatprep.subr.bf16.mxu0 0
  %426 = vmatpush1.bf16.xpose.msra.mxu0 %v334
  %427 = vmatprep.subr.bf16.mxu0 0
  %428 = vmatpush1.bf16.xpose.msra.mxu0 %v337
  %429 = vmatprep.subr.bf16.mxu0 0
  %430 = vmatpush1.bf16.xpose.msra.mxu0 %v340
  %431 = vmatprep.subr.bf16.mxu0 0
  %432 = vmatpush1.bf16.xpose.msra.mxu0 %v343
  %433 = vmatprep.subr.bf16.mxu0 0
  %434 = vmatpush1.bf16.xpose.msra.mxu0 %v346
  %435 = vmatprep.subr.bf16.mxu0 0
  %436 = vmatpush1.bf16.xpose.msra.mxu0 %v349
  %437 = vmatprep.subr.bf16.mxu0 0
  %438 = vmatpush1.bf16.xpose.msra.mxu0 %v352
  %439 = vmatprep.subr.bf16.mxu0 0
  %440 = vmatpush1.bf16.xpose.msra.mxu0 %v355
  %441 = vmatprep.subr.bf16.mxu0 0
  %442 = vmatpush1.bf16.xpose.msra.mxu0 %v358
  %443 = vmatprep.subr.bf16.mxu0 0
  %444 = vmatpush1.bf16.xpose.msra.mxu0 %v361
  %445 = vmatprep.subr.bf16.mxu0 0
  %446 = vmatpush1.bf16.xpose.msra.mxu0 %v364
  %447 = vmatprep.subr.bf16.mxu0 0
  %448 = vmatpush1.bf16.xpose.msra.mxu0 %v367
  %449 = vmatprep.mubr.bf16.mxu0 0
  %450 = vmatmul.mubr.bf16.gmra.mrb[0].mxu0 %v319
  %v451 = vpop.f32.mrb[0].mxu0
  %v452 = vadd.f32 0.0, %v451
  %v453 = vpop.f32.mrb[0].mxu0
  %v454 = vadd.f32 0.0, %v453
  %v455 = vpop.f32.mrb[0].mxu0
  %v456 = vpop.f32.mrb[0].mxu0
  %457 = vdwg.mxu0
  %458 = vmatprep.subr.bf16.mxu0 0
  %459 = vmatpush1.bf16.xpose.msra.mxu0 %v370
  %460 = vmatprep.subr.bf16.mxu0 0
  %461 = vmatpush1.bf16.xpose.msra.mxu0 %v373
  %462 = vmatprep.subr.bf16.mxu0 0
  %463 = vmatpush1.bf16.xpose.msra.mxu0 %v376
  %464 = vmatprep.subr.bf16.mxu0 0
  %465 = vmatpush1.bf16.xpose.msra.mxu0 %v379
  %466 = vmatprep.subr.bf16.mxu0 0
  %467 = vmatpush1.bf16.xpose.msra.mxu0 %v382
  %468 = vmatprep.subr.bf16.mxu0 0
  %469 = vmatpush1.bf16.xpose.msra.mxu0 %v385
  %470 = vmatprep.subr.bf16.mxu0 0
  %471 = vmatpush1.bf16.xpose.msra.mxu0 %v388
  %472 = vmatprep.subr.bf16.mxu0 0
  %473 = vmatpush1.bf16.xpose.msra.mxu0 %v391
  %474 = vmatprep.subr.bf16.mxu0 0
  %475 = vmatpush1.bf16.xpose.msra.mxu0 %v394
  %476 = vmatprep.subr.bf16.mxu0 0
  %477 = vmatpush1.bf16.xpose.msra.mxu0 %v397
  %478 = vmatprep.subr.bf16.mxu0 0
  %479 = vmatpush1.bf16.xpose.msra.mxu0 %v400
  %480 = vmatprep.subr.bf16.mxu0 0
  %481 = vmatpush1.bf16.xpose.msra.mxu0 %v403
  %482 = vmatprep.subr.bf16.mxu0 0
  %483 = vmatpush1.bf16.xpose.msra.mxu0 %v406
  %484 = vmatprep.subr.bf16.mxu0 0
  %485 = vmatpush1.bf16.xpose.msra.mxu0 %v409
  %486 = vmatprep.subr.bf16.mxu0 0
  %487 = vmatpush1.bf16.xpose.msra.mxu0 %v412
  %488 = vmatprep.subr.bf16.mxu0 0
  %489 = vmatpush1.bf16.xpose.msra.mxu0 %v415
  %490 = vmatprep.mubr.bf16.mxu0 0
  %491 = vmatmul.mubr.bf16.gmra.mrb[0].mxu0 %v319
  %v492 = vpop.f32.mrb[0].mxu0
  %v493 = vadd.f32 0.0, %v492
  %v494 = vpop.f32.mrb[0].mxu0
  %v495 = vadd.f32 0.0, %v494
  %v496 = vpop.f32.mrb[0].mxu0
  %v497 = vpop.f32.mrb[0].mxu0
  %498 = vdwg.mxu0
  %v563 = vunpack.c.l.b16 %v93
  %v564 = vunpack.c.l.b16 %v94
  %v565 = vunpack.c.l.b16 %v95
  %v566 = vunpack.c.l.b16 %v96
  %v567 = vunpack.c.l.b16 %v97
  %v568 = vunpack.c.l.b16 %v98
  %v569 = vunpack.c.l.b16 %v99
  %v570 = vunpack.c.l.b16 %v100
  %v571 = vunpack.c.l.b16 %v101
  %v572 = vunpack.c.l.b16 %v102
  %v573 = vunpack.c.l.b16 %v103
  %v574 = vunpack.c.l.b16 %v104
  %v575 = vunpack.c.l.b16 %v105
  %v576 = vunpack.c.l.b16 %v106
  %v577 = vunpack.c.l.b16 %v107
  %v578 = vunpack.c.l.b16 %v108
  %v579 = vunpack.c.l.b16 %v109
  %v580 = vunpack.c.l.b16 %v110
  %v581 = vunpack.c.l.b16 %v111
  %v582 = vunpack.c.l.b16 %v112
  %v583 = vunpack.c.l.b16 %v113
  %v584 = vunpack.c.l.b16 %v114
  %v585 = vunpack.c.l.b16 %v115
  %v586 = vunpack.c.l.b16 %v116
  %v587 = vunpack.c.l.b16 %v117
  %v588 = vunpack.c.l.b16 %v118
  %v589 = vunpack.c.l.b16 %v119
  %v590 = vunpack.c.l.b16 %v120
  %v591 = vunpack.c.l.b16 %v121
  %v592 = vunpack.c.l.b16 %v122
  %v593 = vunpack.c.l.b16 %v123
  %v594 = vunpack.c.l.b16 %v124
  %v595 = vunpack.c.l.b16 %v125
  %v596 = vunpack.c.l.b16 %v126
  %v597 = vunpack.c.l.b16 %v127
  %v598 = vunpack.c.l.b16 %v128
  %v599 = vunpack.c.l.b16 %v129
  %v600 = vunpack.c.l.b16 %v130
  %v601 = vunpack.c.l.b16 %v131
  %v602 = vunpack.c.l.b16 %v132
  %v603 = vunpack.c.l.b16 %v133
  %v604 = vunpack.c.l.b16 %v134
  %v605 = vunpack.c.l.b16 %v135
  %v606 = vunpack.c.l.b16 %v136
  %v607 = vunpack.c.l.b16 %v137
  %v608 = vunpack.c.l.b16 %v138
  %v609 = vunpack.c.l.b16 %v139
  %v610 = vunpack.c.l.b16 %v140
  %v611 = vunpack.c.l.b16 %v141
  %v612 = vunpack.c.l.b16 %v142
  %v613 = vunpack.c.l.b16 %v143
  %v614 = vunpack.c.l.b16 %v144
  %v615 = vunpack.c.l.b16 %v145
  %v616 = vunpack.c.l.b16 %v146
  %v617 = vunpack.c.l.b16 %v147
  %v618 = vunpack.c.l.b16 %v148
  %v619 = vunpack.c.l.b16 %v149
  %v620 = vunpack.c.l.b16 %v150
  %v621 = vunpack.c.l.b16 %v151
  %v622 = vunpack.c.l.b16 %v152
  %v623 = vunpack.c.l.b16 %v153
  %v624 = vunpack.c.l.b16 %v154
  %v625 = vunpack.c.l.b16 %v155
  %v626 = vunpack.c.l.b16 %v156
  %v627 = vpack.c.b16 %v564, %v563
  %v628 = vpack.c.b16 %v566, %v565
  %v629 = vpack.c.b16 %v568, %v567
  %v630 = vpack.c.b16 %v570, %v569
  %v631 = vpack.c.b16 %v572, %v571
  %v632 = vpack.c.b16 %v574, %v573
  %v633 = vpack.c.b16 %v576, %v575
  %v634 = vpack.c.b16 %v578, %v577
  %v635 = vpack.c.b16 %v580, %v579
  %v636 = vpack.c.b16 %v582, %v581
  %v637 = vpack.c.b16 %v584, %v583
  %v638 = vpack.c.b16 %v586, %v585
  %v639 = vpack.c.b16 %v588, %v587
  %v640 = vpack.c.b16 %v590, %v589
  %v641 = vpack.c.b16 %v592, %v591
  %v642 = vpack.c.b16 %v594, %v593
  %v643 = vpack.c.b16 %v596, %v595
  %v644 = vpack.c.b16 %v598, %v597
  %v645 = vpack.c.b16 %v600, %v599
  %v646 = vpack.c.b16 %v602, %v601
  %v647 = vpack.c.b16 %v604, %v603
  %v648 = vpack.c.b16 %v606, %v605
  %v649 = vpack.c.b16 %v608, %v607
  %v650 = vpack.c.b16 %v610, %v609
  %v651 = vpack.c.b16 %v612, %v611
  %v652 = vpack.c.b16 %v614, %v613
  %v653 = vpack.c.b16 %v616, %v615
  %v654 = vpack.c.b16 %v618, %v617
  %v655 = vpack.c.b16 %v620, %v619
  %v656 = vpack.c.b16 %v622, %v621
  %v657 = vpack.c.b16 %v624, %v623
  %v658 = vpack.c.b16 %v626, %v625
  %v660 = vsel %vm317, %v28, 0
  %v663 = vsel %vm317, %v627, 0
  %v666 = vsel %vm317, %v628, 0
  %v669 = vsel %vm317, %v629, 0
  %v672 = vsel %vm317, %v630, 0
  %v675 = vsel %vm317, %v631, 0
  %v678 = vsel %vm317, %v632, 0
  %v681 = vsel %vm317, %v633, 0
  %v684 = vsel %vm317, %v634, 0
  %v687 = vsel %vm317, %v635, 0
  %v690 = vsel %vm317, %v636, 0
  %v693 = vsel %vm317, %v637, 0
  %v696 = vsel %vm317, %v638, 0
  %v699 = vsel %vm317, %v639, 0
  %v702 = vsel %vm317, %v640, 0
  %v705 = vsel %vm317, %v641, 0
  %v708 = vsel %vm317, %v642, 0
  %v711 = vsel %vm317, %v643, 0
  %v714 = vsel %vm317, %v644, 0
  %v717 = vsel %vm317, %v645, 0
  %v720 = vsel %vm317, %v646, 0
  %v723 = vsel %vm317, %v647, 0
  %v726 = vsel %vm317, %v648, 0
  %v729 = vsel %vm317, %v649, 0
  %v732 = vsel %vm317, %v650, 0
  %v735 = vsel %vm317, %v651, 0
  %v738 = vsel %vm317, %v652, 0
  %v741 = vsel %vm317, %v653, 0
  %v744 = vsel %vm317, %v654, 0
  %v747 = vsel %vm317, %v655, 0
  %v750 = vsel %vm317, %v656, 0
  %v753 = vsel %vm317, %v657, 0
  %v756 = vsel %vm317, %v658, 0
  %758 = vmatprep.subr.bf16.mxu0 0
  %759 = vmatpush1.bf16.xpose.msra.mxu0 %v663
  %760 = vmatprep.subr.bf16.mxu0 0
  %761 = vmatpush1.bf16.xpose.msra.mxu0 %v666
  %762 = vmatprep.subr.bf16.mxu0 0
  %763 = vmatpush1.bf16.xpose.msra.mxu0 %v669
  %764 = vmatprep.subr.bf16.mxu0 0
  %765 = vmatpush1.bf16.xpose.msra.mxu0 %v672
  %766 = vmatprep.subr.bf16.mxu0 0
  %767 = vmatpush1.bf16.xpose.msra.mxu0 %v675
  %768 = vmatprep.subr.bf16.mxu0 0
  %769 = vmatpush1.bf16.xpose.msra.mxu0 %v678
  %770 = vmatprep.subr.bf16.mxu0 0
  %771 = vmatpush1.bf16.xpose.msra.mxu0 %v681
  %772 = vmatprep.subr.bf16.mxu0 0
  %773 = vmatpush1.bf16.xpose.msra.mxu0 %v684
  %774 = vmatprep.subr.bf16.mxu0 0
  %775 = vmatpush1.bf16.xpose.msra.mxu0 %v687
  %776 = vmatprep.subr.bf16.mxu0 0
  %777 = vmatpush1.bf16.xpose.msra.mxu0 %v690
  %778 = vmatprep.subr.bf16.mxu0 0
  %779 = vmatpush1.bf16.xpose.msra.mxu0 %v693
  %780 = vmatprep.subr.bf16.mxu0 0
  %781 = vmatpush1.bf16.xpose.msra.mxu0 %v696
  %782 = vmatprep.subr.bf16.mxu0 0
  %783 = vmatpush1.bf16.xpose.msra.mxu0 %v699
  %784 = vmatprep.subr.bf16.mxu0 0
  %785 = vmatpush1.bf16.xpose.msra.mxu0 %v702
  %786 = vmatprep.subr.bf16.mxu0 0
  %787 = vmatpush1.bf16.xpose.msra.mxu0 %v705
  %788 = vmatprep.subr.bf16.mxu0 0
  %789 = vmatpush1.bf16.xpose.msra.mxu0 %v708
  %790 = vmatprep.mubr.bf16.mxu0 0
  %791 = vmatmul.mubr.bf16.gmra.mrb[0].mxu0 %v660
  %v792 = vpop.f32.mrb[0].mxu0
  %v793 = vadd.f32 0.0, %v792
  %v794 = vpop.f32.mrb[0].mxu0
  %v795 = vadd.f32 0.0, %v794
  %v796 = vpop.f32.mrb[0].mxu0
  %v797 = vpop.f32.mrb[0].mxu0
  %798 = vdwg.mxu0
  %799 = vmatprep.subr.bf16.mxu0 0
  %800 = vmatpush1.bf16.xpose.msra.mxu0 %v711
  %801 = vmatprep.subr.bf16.mxu0 0
  %802 = vmatpush1.bf16.xpose.msra.mxu0 %v714
  %803 = vmatprep.subr.bf16.mxu0 0
  %804 = vmatpush1.bf16.xpose.msra.mxu0 %v717
  %805 = vmatprep.subr.bf16.mxu0 0
  %806 = vmatpush1.bf16.xpose.msra.mxu0 %v720
  %807 = vmatprep.subr.bf16.mxu0 0
  %808 = vmatpush1.bf16.xpose.msra.mxu0 %v723
  %809 = vmatprep.subr.bf16.mxu0 0
  %810 = vmatpush1.bf16.xpose.msra.mxu0 %v726
  %811 = vmatprep.subr.bf16.mxu0 0
  %812 = vmatpush1.bf16.xpose.msra.mxu0 %v729
  %813 = vmatprep.subr.bf16.mxu0 0
  %814 = vmatpush1.bf16.xpose.msra.mxu0 %v732
  %815 = vmatprep.subr.bf16.mxu0 0
  %816 = vmatpush1.bf16.xpose.msra.mxu0 %v735
  %817 = vmatprep.subr.bf16.mxu0 0
  %818 = vmatpush1.bf16.xpose.msra.mxu0 %v738
  %819 = vmatprep.subr.bf16.mxu0 0
  %820 = vmatpush1.bf16.xpose.msra.mxu0 %v741
  %821 = vmatprep.subr.bf16.mxu0 0
  %822 = vmatpush1.bf16.xpose.msra.mxu0 %v744
  %823 = vmatprep.subr.bf16.mxu0 0
  %824 = vmatpush1.bf16.xpose.msra.mxu0 %v747
  %825 = vmatprep.subr.bf16.mxu0 0
  %826 = vmatpush1.bf16.xpose.msra.mxu0 %v750
  %827 = vmatprep.subr.bf16.mxu0 0
  %828 = vmatpush1.bf16.xpose.msra.mxu0 %v753
  %829 = vmatprep.subr.bf16.mxu0 0
  %830 = vmatpush1.bf16.xpose.msra.mxu0 %v756
  %831 = vmatprep.mubr.bf16.mxu0 0
  %832 = vmatmul.mubr.bf16.gmra.mrb[0].mxu0 %v660
  %v833 = vpop.f32.mrb[0].mxu0
  %v834 = vadd.f32 0.0, %v833
  %v835 = vpop.f32.mrb[0].mxu0
  %v836 = vadd.f32 0.0, %v835
  %v837 = vpop.f32.mrb[0].mxu0
  %v838 = vpop.f32.mrb[0].mxu0
  %839 = vdwg.mxu0
  %v840 = vmax.f32 %v452, %v454
  %v841 = vmax.f32 %v793, %v795
  %v842 = vmax.f32 %v840, %v493
  %v843 = vmax.f32 %v841, %v834
  %v844 = vmax.f32 %v842, %v495
  %v845 = vmax.f32 %v843, %v836
  %v846 = vld [vmem:[#allocation2] sm:$0xff]
  %v847 = vld [vmem:[#allocation4] sm:$0xff]
  %v848 = vmax.f32 %v846, %v844
  %v849 = vmax.f32 %v847, %v845
  %v850 = vsub.f32 %v846, %v848
  %v851 = vmul.f32 %v850, 1.442695
  %v852 = vpow.pop %v851
  %v853 = vsub.f32 %v847, %v849
  %v854 = vmul.f32 %v853, 1.442695
  %v855 = vpow.pop %v854
  %v856 = vld [vmem:[#allocation3] sm:$0xff]
  %v857 = vmul.f32 %v856, %v852
  %v858 = vld [vmem:[#allocation5] sm:$0xff]
  %v859 = vmul.f32 %v858, %v855
  %v860 = vld [vmem:[#allocation6] sm:$0xff]
  %v861 = vmul.f32 %v860, %v855
  %v862 = vsub.f32 %v452, %v848
  %v863 = vmul.f32 %v862, 1.442695
  %v864 = vpow.pop %v863
  %v865 = vadd.f32 %v857, %v864
  %v866 = vsub.f32 %v793, %v849
  %v867 = vmul.f32 %v866, 1.442695
  %v868 = vpow.pop %v867
  %v869 = vadd.f32 %v859, %v868
  %v870 = vsub.f32 %v793, %v452
  %v871 = vmul.f32 %v868, %v870
  %v872 = vadd.f32 %v861, %v871
  %v873 = vsub.f32 %v454, %v848
  %v874 = vmul.f32 %v873, 1.442695
  %v875 = vpow.pop %v874
  %v876 = vadd.f32 %v865, %v875
  %v877 = vsub.f32 %v795, %v849
  %v878 = vmul.f32 %v877, 1.442695
  %v879 = vpow.pop %v878
  %v880 = vadd.f32 %v869, %v879
  %v881 = vsub.f32 %v795, %v454
  %v882 = vmul.f32 %v879, %v881
  %v883 = vadd.f32 %v872, %v882
  %v884 = vsub.f32 %v493, %v848
  %v885 = vmul.f32 %v884, 1.442695
  %v886 = vpow.pop %v885
  %v887 = vadd.f32 %v876, %v886
  %v888 = vsub.f32 %v834, %v849
  %v889 = vmul.f32 %v888, 1.442695
  %v890 = vpow.pop %v889
  %v891 = vadd.f32 %v880, %v890
  %v892 = vsub.f32 %v834, %v493
  %v893 = vmul.f32 %v890, %v892
  %v894 = vadd.f32 %v883, %v893
  %v895 = vsub.f32 %v495, %v848
  %v896 = vmul.f32 %v895, 1.442695
  %v897 = vpow.pop %v896
  %v898 = vadd.f32 %v887, %v897
  %v899 = vsub.f32 %v836, %v849
  %v900 = vmul.f32 %v899, 1.442695
  %v901 = vpow.pop %v900
  %v902 = vadd.f32 %v891, %v901
  %v903 = vsub.f32 %v836, %v495
  %v904 = vmul.f32 %v901, %v903
  %v905 = vadd.f32 %v894, %v904
  %906 = vst [vmem:[#allocation2] sm:$0xff] %v848
  %907 = vst [vmem:[#allocation4] sm:$0xff] %v849
  %908 = vst [vmem:[#allocation3] sm:$0xff] %v898
  %909 = vst [vmem:[#allocation5] sm:$0xff] %v902
  %910 = vst [vmem:[#allocation6] sm:$0xff] %v905
  // Predicated region
  $region22: #{fused_kl_div_loss.1} parent=0 // pred_check
    %p911 = pneg %p18
  $region23: #{fused_kl_div_loss.1} parent=0 // pred_check_branch
    %913 = sbr.rel (%p911) target = $region25
  $region24: #{fused_kl_div_loss.1} parent=0 // pred_region
    %914 = vmax.xlane.f32.xlu0 %v848
    %v915 = vpop.xlane.xlu0 %914
    %v916 = vsub.f32 %v848, %v915
    %v917 = vmul.f32 %v916, 1.442695
    %v918 = vpow.pop %v917
    %v919 = vmul.f32 %v898, %v918
    %920 = vadd.xlane.f32.xlu0 %v919
    %v921 = vpop.xlane.xlu0 %920
    %922 = vmax.xlane.f32.xlu0 %v849
    %v923 = vpop.xlane.xlu0 %922
    %v924 = vsub.f32 %v849, %v923
    %v925 = vmul.f32 %v924, 1.442695
    %v926 = vpow.pop %v925
    %v927 = vmul.f32 %v902, %v926
    %928 = vadd.xlane.f32.xlu0 %v927
    %v929 = vpop.xlane.xlu0 %928
    %v930 = vmul.f32 %v905, %v926
    %931 = vadd.xlane.f32.xlu0 %v930
    %v932 = vpop.xlane.xlu0 %931
    %v933 = vlog2.pop %v921
    %v934 = vmul.f32 %v933, 0.6931472
    %v935 = vadd.f32 %v915, %v934
    %v936 = vlog2.pop %v929
    %v937 = vmul.f32 %v936, 0.6931472
    %v938 = vadd.f32 %v923, %v937
    %v939 = vrcp.pop %v929
    %v940 = vmul.f32 %v932, %v939
    %v941 = vsub.f32 %v935, %v938
    %v942 = vadd.f32 %v940, %v941
    %vm943 = vcmask 7168
    %944 = vst.msk [vmem:[%s4] sm:$0xff] %vm943, %v942
  $region25: #{fused_kl_div_loss.1} parent=0 // pred_fallthru
    _
  // Predicated region
  $region26: #{fused_kl_div_loss.1} parent=0 // pred_check
    _
  $region27: #{fused_kl_div_loss.1} parent=0 // pred_check_branch
    %946 = sbr.rel (0) target = $region29
  $region28: #{fused_kl_div_loss.1} parent=0 // pred_region
    _
  $region29: #{fused_kl_div_loss.1} parent=0 // pred_fallthru
    _
  // Predicated region
  $region30: #{fused_kl_div_loss.1} parent=0 // pred_check
    _
  $region31: #{fused_kl_div_loss.1} parent=0 // pred_check_branch
    %948 = sbr.rel (0) target = $region33
  $region32: #{fused_kl_div_loss.1} parent=0 // pred_region
    _
  $region33: #{fused_kl_div_loss.1} parent=0 // pred_fallthru
    _

</llo_original>
